<compile_context>
chip_gen: v6e
topology: v6e:2x2x1
jax: 0.10.0
libtpu: 0.0.40
codegen_flags: <defaults>
</compile_context>

<pallas_src>
import functools

import jax
import jax.numpy as jnp
from jax.experimental import pallas as pl
from jax.experimental.pallas import tpu as pltpu


# ---------------------------------------------------------------------------
# Kernel body: elementwise broadcast of the (1, TILE_H) weight over rows.
# ---------------------------------------------------------------------------
def _textprompt_kernel(w_ref, x_ref, o_ref, *, prompttype):
    # w_ref: (1, TILE_H), x_ref / o_ref: (TILE_N, TILE_H), all in VMEM.
    if prompttype == "mul":
        o_ref[...] = w_ref[...] * x_ref[...]
    else:  # "add"
        o_ref[...] = w_ref[...] + x_ref[...]


# Tile budget: 4 double-buffered tiles (x in + out) must stay well under the
# smallest scoped-VMEM default across generations (v5e: 16 MiB).
_VMEM_TILE_BUDGET_BYTES = 12 * 1024 * 1024
_MAX_TILE_N = 1024   # >=512 rows reaches ~85% of HBM roofline, 1024 ~86%
_MAX_TILE_H = 2048   # lane-axis tile (multiple of 128) for very wide hidden dims


def _choose_tiles(n, h, itemsize, tile_n, tile_h):
    sublane = {4: 8, 2: 16, 1: 32}.get(itemsize, 8)
    if tile_h is None:
        tile_h = min(h, _MAX_TILE_H)
    if tile_h >= h:
        tile_h = h                      # block equals the full dim (always legal)
    else:
        assert tile_h % 128 == 0, "tile_h must be a multiple of 128 (lane width)"
    if tile_n is None:
        rows = _VMEM_TILE_BUDGET_BYTES // (4 * tile_h * itemsize)
        tile_n = max(sublane, min(_MAX_TILE_N, (rows // sublane) * sublane))
    if tile_n >= n:
        tile_n = n                      # single (full-dim) block along rows
    else:
        tile_n = max(sublane, (tile_n // sublane) * sublane)
    return tile_n, tile_h


def _textprompt_pallas(x, w, prompttype, tile_n, tile_h):
    n, h = x.shape
    tile_n, tile_h = _choose_tiles(n, h, x.dtype.itemsize, tile_n, tile_h)
    grid = (pl.cdiv(n, tile_n), pl.cdiv(h, tile_h))

    kernel = functools.partial(_textprompt_kernel, prompttype=prompttype)
    return pl.pallas_call(
        kernel,
        out_shape=jax.ShapeDtypeStruct((n, h), x.dtype),
        grid_spec=pltpu.PrefetchScalarGridSpec(
            num_scalar_prefetch=0,
            grid=grid,
            in_specs=[
                # weight: constant along rows, tiled along the hidden axis.
                pl.BlockSpec((1, tile_h), lambda i, j: (0, j)),
                # x: (tile_n, tile_h) tiles; ragged last blocks are masked by Pallas.
                pl.BlockSpec((tile_n, tile_h), lambda i, j: (i, j)),
            ],
            out_specs=pl.BlockSpec((tile_n, tile_h), lambda i, j: (i, j)),
        ),
        compiler_params=pltpu.CompilerParams(
            dimension_semantics=("parallel", "parallel"),
            vmem_limit_bytes=32 * 1024 * 1024,
        ),
    )(w, x)


def textprompt_forward(graph_embedding, weight, prompttype="mul",
                       tile_n=None, tile_h=None):
    """Pallas implementation of textprompt.forward.

    graph_embedding: [N, H]
    weight:          [1, H]
    """
    n, h = graph_embedding.shape
    assert weight.shape == (1, h)

    if prompttype not in ("mul", "add"):
        # PyTorch forward returns the input unchanged for unknown types.
        # Short-circuit instead of launching a copy kernel (saves 2*N*H HBM traffic).
        return graph_embedding

    if h % 128 == 0:
        # Already lane-dense: run directly.
        return _textprompt_pallas(graph_embedding, weight, prompttype, tile_n, tile_h)

    if (128 % h == 0) and ((n * h) % 128 == 0):
        # Lane-densify: view [N, H] as [N*H/128, 128] and tile the weight along lanes.
        # mul/add broadcast over rows, so the periodic weight pattern is equivalent.
        rep = 128 // h
        x2 = graph_embedding.reshape(n * h // 128, 128)
        w2 = jnp.tile(weight, (1, rep))
        out = _textprompt_pallas(x2, w2, prompttype, tile_n, tile_h)
        return out.reshape(n, h)

    # Awkward hidden width: plain XLA is correct and faster than masked partial stores.
    if prompttype == "mul":
        return weight * graph_embedding
    return weight + graph_embedding


def init_textprompt_weight(key, hid_units):
    """Xavier-uniform init matching torch.nn.init.xavier_uniform_ on a (1, hid_units) tensor."""
    fan_out, fan_in = 1, hid_units
    bound = jnp.sqrt(6.0 / (fan_in + fan_out))
    return jax.random.uniform(
        key, (1, hid_units), dtype=jnp.float32, minval=-bound, maxval=bound
    )


def textprompt_reference(graph_embedding, weight, prompttype="mul"):
    if prompttype == "add":
        return jnp.tile(weight, (graph_embedding.shape[0], 1)) + graph_embedding
    if prompttype == "mul":
        return weight * graph_embedding
    return graph_embedding


if __name__ == "__main__":
    key = jax.random.PRNGKey(0)
    k_w, k_x = jax.random.split(key)

    # Shapes consistent with the module: hid_units=32, a batch of 8 graph embeddings.
    N, H = 8, 32
    weight = init_textprompt_weight(k_w, H)
    x = jax.random.normal(k_x, (N, H), dtype=jnp.float32)

    # 'mul' (default) — exercises the lane-densify path (H=32 -> [2, 128] lane-dense tiles).
    out_mul = jax.block_until_ready(textprompt_forward(x, weight, "mul"))
    assert jnp.allclose(out_mul, textprompt_reference(x, weight, "mul"), atol=1e-6), "mul mismatch"

    # 'add' mode.
    out_add = jax.block_until_ready(textprompt_forward(x, weight, "add"))
    assert jnp.allclose(out_add, textprompt_reference(x, weight, "add"), atol=1e-6), "add mismatch"

    # Lane-dense path with a ragged row count (grid = cdiv(N, tile_n), masked last block).
    N2, H2 = 50, 128
    k_w2, k_x2 = jax.random.split(k_x)
    weight2 = init_textprompt_weight(k_w2, H2)
    x2 = jax.random.normal(k_x2, (N2, H2), dtype=jnp.float32)
    out2 = jax.block_until_ready(textprompt_forward(x2, weight2, "mul", tile_n=16))
    assert jnp.allclose(out2, textprompt_reference(x2, weight2, "mul"), atol=1e-6), "ragged mismatch"

    # Unknown prompt type short-circuits (no kernel launched, input returned unchanged).
    out_id = jax.block_until_ready(textprompt_forward(x, weight, "none"))
    assert jnp.allclose(out_id, x), "identity mismatch"

    print("KERNEL_OK")
</pallas_src>

<mosaic_0001>
module attributes {stable_mosaic.version = 11 : i64} {
  func.func @_textprompt_kernel(%arg0: i32, %arg1: i32, %arg2: memref<1x128xf32, #tpu.memory_space<vmem>>, %arg3: memref<2x128xf32, #tpu.memory_space<vmem>>, %arg4: memref<2x128xf32, #tpu.memory_space<vmem>>) attributes {dimension_semantics = [#tpu.dimension_semantics<parallel>, #tpu.dimension_semantics<parallel>], iteration_bounds = array<i64: 1, 1>, scalar_prefetch = 0 : i64, scratch_operands = 0 : i64, tpu.core_type = #tpu.core_type<tc>, window_params = [{transform_indices = @transform_0, window_bounds = array<i64: 1, 128>}, {transform_indices = @transform_1, window_bounds = array<i64: 2, 128>}, {transform_indices = @transform_2, window_bounds = array<i64: 2, 128>}]} {
    %c0 = arith.constant 0 : index
    %c0_0 = arith.constant 0 : index
    %0 = vector.load %arg2[%c0, %c0_0] : memref<1x128xf32, #tpu.memory_space<vmem>>, vector<1x128xf32>
    %c0_1 = arith.constant 0 : index
    %c0_2 = arith.constant 0 : index
    %1 = vector.load %arg3[%c0_1, %c0_2] : memref<2x128xf32, #tpu.memory_space<vmem>>, vector<2x128xf32>
    %2 = vector.broadcast %0 : vector<1x128xf32> to vector<2x128xf32>
    %3 = arith.mulf %2, %1 : vector<2x128xf32>
    %c0_3 = arith.constant 0 : index
    %c0_4 = arith.constant 0 : index
    %4 = vector.load %arg4[%c0_3, %c0_4] : memref<2x128xf32, #tpu.memory_space<vmem>>, vector<2x128xf32>
    tpu.vector_store %arg4[%c0_3, %c0_4], %3 {strides = array<i32>} : memref<2x128xf32, #tpu.memory_space<vmem>>, vector<2x128xf32>,
    return
  }
  func.func @transform_0(%arg0: i32, %arg1: i32) -> (i32, i32) {
    %c0_i32 = arith.constant 0 : i32
    %c0_i32_0 = arith.constant 0 : i32
    return %c0_i32, %arg1 : i32, i32
  }
  func.func @transform_1(%arg0: i32, %arg1: i32) -> (i32, i32) {
    %c0_i32 = arith.constant 0 : i32
    return %arg0, %arg1 : i32, i32
  }
  func.func @transform_2(%arg0: i32, %arg1: i32) -> (i32, i32) {
    %c0_i32 = arith.constant 0 : i32
    return %arg0, %arg1 : i32, i32
  }
}

</mosaic_0001>

<llo_original>
// kernel: tpu_custom_call.1
$region0: #{tpu_custom_call.1}
  #allocation0 [shape = 'u32[]', space=smem, size = 0x4, offset = 0x4, fixed_abs, tag = 'smem constant byte address 0x4 - core index']
  #allocation1 [shape = 'u32[144,128]{1,0:T(1,128)}', space=vmem, size = 0x12000, scoped, tag = 'internal scratch']
  %s0 = inlined_call_operand.hbm [shape: f32[1,128], index: 0, kind: input, shape index: {}]
  %s1 = inlined_call_operand.hbm [shape: f32[2,128], index: 1, kind: input, shape index: {}]
  %s2 = inlined_call_operand.hbm [shape: f32[2,128], index: 2, kind: output, shape index: {}]
  %s3 = sld [smem:[#allocation0]]
  $region26: #{tpu_custom_call.1} parent=0
    _
  %s5 = ssub.s32 1, %s3
  %s6 = scalar_select 0, %s5, %s3
  $region1: #{tpu_custom_call.1} parent=0
    #allocation2 [shape = 'u8[512]{0}', space=vmem, size = 0x400, scoped, tag = 'input window, operand 0, single buffered']
    #allocation3 [shape = 's32[1]{0}', space=sflag, size = 0x4, scoped, tag = 'scoped memory for tpu_custom_call.1']
    #allocation4 [shape = 's32[1]{0}', space=sflag, size = 0x4, scoped, tag = 'scoped memory for tpu_custom_call.1']
    #allocation5 [shape = 'u8[1024]{0}', space=vmem, size = 0x400, scoped, tag = 'input window, operand 1, single buffered']
    #allocation6 [shape = 's32[1]{0}', space=sflag, size = 0x4, scoped, tag = 'scoped memory for tpu_custom_call.1']
    #allocation7 [shape = 'u8[1024]{0}', space=vmem, size = 0x400, scoped, tag = 'output window, operand 0, single buffered']
    %7 = vsyncpa [#allocation3], 0
    %8 = vsyncpa [#allocation6], 0
    %9 = vsyncpa [#allocation4], 0
    // Predicated region
    $region2: #{tpu_custom_call.1} parent=1 // pred_check
      _
    $region3: #{tpu_custom_call.1} parent=1 // pred_check_branch
      %11 = sbr.rel (0) target = $region5
    $region4: #{tpu_custom_call.1} parent=1 // pred_region
      %s13 = ssub.s32 16, 16
      %14 = vsyncadd [#allocation3], %s13
      %s16 = sshll.u32 [#allocation2], 4
      %s17 = int_to_ptr.vmem [resolvable:$true] %s16
      %19 = dma.hbm_to_vmem [thread:$0]  %s0, 16, %s17, [#allocation3]
    $region5: #{tpu_custom_call.1} parent=1 // pred_fallthru
      _
    // Predicated region
    $region6: #{tpu_custom_call.1} parent=1 // pred_check
      _
    $region7: #{tpu_custom_call.1} parent=1 // pred_check_branch
      %21 = sbr.rel (0) target = $region9
    $region8: #{tpu_custom_call.1} parent=1 // pred_region
      %s23 = ssub.s32 32, 32
      %24 = vsyncadd [#allocation6], %s23
      %s26 = sshll.u32 [#allocation5], 4
      %s27 = int_to_ptr.vmem [resolvable:$true] %s26
      %29 = dma.hbm_to_vmem [thread:$0]  %s1, 32, %s27, [#allocation6]
    $region9: #{tpu_custom_call.1} parent=1 // pred_fallthru
      _
    // Predicated region
    $region10: #{tpu_custom_call.1} parent=1 // pred_check
      _
    $region11: #{tpu_custom_call.1} parent=1 // pred_check_branch
      %31 = sbr.rel (0) target = $region13
    $region12: #{tpu_custom_call.1} parent=1 // pred_region
      %32 = dma.done [#allocation3], 16
    $region13: #{tpu_custom_call.1} parent=1 // pred_fallthru
      _
    // Predicated region
    $region14: #{tpu_custom_call.1} parent=1 // pred_check
      _
    $region15: #{tpu_custom_call.1} parent=1 // pred_check_branch
      %34 = sbr.rel (0) target = $region17
    $region16: #{tpu_custom_call.1} parent=1 // pred_region
      %35 = dma.done [#allocation6], 32
    $region17: #{tpu_custom_call.1} parent=1 // pred_fallthru
      _
    %v36 = vld [vmem:[#allocation2] sm:$0x1]
    %v37 = vld [vmem:[#allocation5] sm:$0x3]
    %v39 = vlaneseq
    %v40 = vshrl.u32 %v39, 7
    %v41 = vsub.s32 0, %v40
    %v42 = vrot.slane %v36, %v41
    %v44 = vmul.f32 %v42, %v37
    %45 = vst [vmem:[#allocation7] sm:$0x3] %v44
    // Predicated region
    $region18: #{tpu_custom_call.1} parent=1 // pred_check
      _
    $region19: #{tpu_custom_call.1} parent=1 // pred_check_branch
      %47 = sbr.rel (0) target = $region21
    $region20: #{tpu_custom_call.1} parent=1 // pred_region
      %s49 = ssub.s32 32, 32
      %50 = vsyncadd [#allocation4], %s49
      %s52 = sshll.u32 [#allocation7], 4
      %s53 = int_to_ptr.vmem [resolvable:$true] %s52
      %55 = dma.vmem_to_hbm [thread:$0]  %s53, 32, %s2, [#allocation4]
    $region21: #{tpu_custom_call.1} parent=1 // pred_fallthru
      _
    // Predicated region
    $region22: #{tpu_custom_call.1} parent=1 // pred_check
      _
    $region23: #{tpu_custom_call.1} parent=1 // pred_check_branch
      %57 = sbr.rel (0) target = $region25
    $region24: #{tpu_custom_call.1} parent=1 // pred_region
      %58 = dma.done [#allocation4], 32
    $region25: #{tpu_custom_call.1} parent=1 // pred_fallthru
      _
    %59 = vsyncpa [#allocation3], 1
    %60 = vsyncpa [#allocation6], 1
    %61 = vsyncpa [#allocation4], 1

</llo_original>
